<compile_context>
chip_gen: v5e
topology: v5e:2x2
jax: 0.10.0
libtpu: 0.0.40
codegen_flags: <defaults>
</compile_context>

<pallas_src>
import functools

import jax
import jax.numpy as jnp
from jax.experimental import pallas as pl
from jax.experimental.pallas import tpu as pltpu


def _fused_conv1x1_leakyrelu_kernel(
    x_ref, w_ref, b_ref, o_ref, *, negative_slope, cin, cout, hout, wout
):
    """One image per grid step.

    x_ref: (cin, H, W)        VMEM  -- raw NCHW image block, no wrapper relayout.
    w_ref: (cin, cout)        SMEM  -- 1x1 ConvTranspose core.
    b_ref: (cout,)            SMEM  -- bias with the "+1" folded in.
    o_ref: (cout, Hout, Wout) VMEM  -- final NCHW output (crop applied here).
    """
    x = x_ref[...]  # one dense load of the whole image block
    # Crop one pixel per border (ConvTranspose2d k=1, stride=1, padding=1).
    xs = [x[ci, 1 : 1 + hout, 1 : 1 + wout] for ci in range(cin)]
    # Channel-inner loop: the `cin` cropped planes stay live in vregs and are
    # reused across all `cout` outputs.
    for co in range(cout):
        y = xs[0] * w_ref[0, co]
        for ci in range(1, cin):
            y = y + xs[ci] * w_ref[ci, co]
        y = y + b_ref[co]
        # leaky-ReLU: max(y, slope*y) == where(y > 0, y, slope*y) for 0<=slope<=1.
        o_ref[co, :, :] = jnp.maximum(y, y * negative_slope)


def model_forward(x_nchw, weight, bias, negative_slope=0.25):
    """x_nchw: (N, Cin, H, W) f32. weight: (Cin, Cout) f32 (1x1 core). bias: (Cout,)."""
    n, cin, h, w = x_nchw.shape
    cout = weight.shape[1]
    hout, wout = h - 2, w - 2  # k=1, stride=1, padding=1 => crop 1 px per side

    x32 = x_nchw.astype(jnp.float32)
    w32 = weight.astype(jnp.float32)
    # Fold the "+1" into the bias: (x+1)@W + b == x@W + (b + sum_ci W[ci,:]).
    b_fused = bias.astype(jnp.float32) + jnp.sum(w32, axis=0)

    kernel = functools.partial(
        _fused_conv1x1_leakyrelu_kernel,
        negative_slope=float(negative_slope),
        cin=cin,
        cout=cout,
        hout=hout,
        wout=wout,
    )

    return pl.pallas_call(
        kernel,
        out_shape=jax.ShapeDtypeStruct((n, cout, hout, wout), jnp.float32),
        grid=(n,),
        in_specs=[
            # Full image per step; batch dim squeezed out of the kernel view.
            pl.BlockSpec((None, cin, h, w), lambda i: (i, 0, 0, 0)),
            pl.BlockSpec(memory_space=pltpu.MemorySpace.SMEM),  # (Cin, Cout) weights
            pl.BlockSpec(memory_space=pltpu.MemorySpace.SMEM),  # fused bias
        ],
        out_specs=pl.BlockSpec((None, cout, hout, wout), lambda i: (i, 0, 0, 0)),
        compiler_params=pltpu.CompilerParams(dimension_semantics=("parallel",)),
    )(x32, w32, b_fused)


def reference_forward(x_nchw, weight, bias, negative_slope=0.25):
    """Pure-JAX reference of the same semantics."""
    n, cin, h, w = x_nchw.shape
    x2 = x_nchw + 1.0
    x_crop = x2[:, :, 1 : h - 1, 1 : w - 1]
    y = jnp.einsum("nchw,cd->ndhw", x_crop, weight) + bias[None, :, None, None]
    return jnp.where(y > 0, y, y * negative_slope)


if __name__ == "__main__":
    key = jax.random.PRNGKey(0)
    k_x, k_w, k_b = jax.random.split(key, 3)

    # Small shapes consistent with the module (3 input channels required).
    N, C_IN, H, W = 2, 3, 16, 16
    C_OUT = 8

    x1 = jax.random.normal(k_x, (N, C_IN, H, W), dtype=jnp.float32)
    # ConvTranspose2d(3, 8, 1) weight is (Cin, Cout, 1, 1); we keep its 1x1
    # core as (Cin, Cout).  Deterministic uniform init like PyTorch's default.
    bound = 1.0 / jnp.sqrt(jnp.float32(C_IN))
    weight = jax.random.uniform(
        k_w, (C_IN, C_OUT), dtype=jnp.float32, minval=-bound, maxval=bound
    )
    bias = jax.random.uniform(
        k_b, (C_OUT,), dtype=jnp.float32, minval=-bound, maxval=bound
    )

    fwd = jax.jit(functools.partial(model_forward, negative_slope=0.25))
    out = fwd(x1, weight, bias)
    out = jax.block_until_ready(out)

    ref = reference_forward(x1, weight, bias, negative_slope=0.25)
    assert out.shape == (N, C_OUT, H - 2, W - 2), out.shape
    assert jnp.allclose(out, ref, atol=1e-5, rtol=1e-5), "mismatch vs reference"

    print("KERNEL_OK")
</pallas_src>

<mosaic_0001>
module attributes {stable_mosaic.version = 11 : i64} {
  func.func @_fused_conv1x1_leakyrelu_kernel(%arg0: i32, %arg1: memref<1x3x16x16xf32, #tpu.memory_space<vmem>>, %arg2: memref<3x8xf32, #tpu.memory_space<smem>>, %arg3: memref<8xf32, #tpu.memory_space<smem>>, %arg4: memref<1x8x14x14xf32, #tpu.memory_space<vmem>>) attributes {dimension_semantics = [#tpu.dimension_semantics<parallel>], iteration_bounds = array<i64: 2>, scalar_prefetch = 0 : i64, scratch_operands = 0 : i64, tpu.core_type = #tpu.core_type<tc>, window_params = [{transform_indices = @transform_0, window_bounds = array<i64: 1, 3, 16, 16>}, {transform_indices = @transform_1, window_bounds = array<i64: 3, 8>}, {transform_indices = @transform_2, window_bounds = array<i64: 8>}, {transform_indices = @transform_3, window_bounds = array<i64: 1, 8, 14, 14>}]} {
    %c0 = arith.constant 0 : index
    %c0_0 = arith.constant 0 : index
    %c0_1 = arith.constant 0 : index
    %c0_2 = arith.constant 0 : index
    %0 = vector.load %arg1[%c0, %c0_0, %c0_1, %c0_2] : memref<1x3x16x16xf32, #tpu.memory_space<vmem>>, vector<1x3x16x16xf32>
    %1 = vector.shape_cast %0 : vector<1x3x16x16xf32> to vector<3x16x16xf32>
    %2 = vector.extract_strided_slice %1 {offsets = [0, 1, 1], sizes = [1, 14, 14], strides = [1, 1, 1]} : vector<3x16x16xf32> to vector<1x14x14xf32>
    %3 = vector.shape_cast %2 : vector<1x14x14xf32> to vector<14x14xf32>
    %4 = vector.extract_strided_slice %1 {offsets = [1, 1, 1], sizes = [1, 14, 14], strides = [1, 1, 1]} : vector<3x16x16xf32> to vector<1x14x14xf32>
    %5 = vector.shape_cast %4 : vector<1x14x14xf32> to vector<14x14xf32>
    %6 = vector.extract_strided_slice %1 {offsets = [2, 1, 1], sizes = [1, 14, 14], strides = [1, 1, 1]} : vector<3x16x16xf32> to vector<1x14x14xf32>
    %7 = vector.shape_cast %6 : vector<1x14x14xf32> to vector<14x14xf32>
    %c0_3 = arith.constant 0 : index
    %c0_4 = arith.constant 0 : index
    %8 = memref.load %arg2[%c0_3, %c0_4] : memref<3x8xf32, #tpu.memory_space<smem>>
    %9 = vector.broadcast %8 : f32 to vector<14x14xf32>
    %10 = arith.mulf %3, %9 : vector<14x14xf32>
    %c1 = arith.constant 1 : index
    %c0_5 = arith.constant 0 : index
    %11 = memref.load %arg2[%c1, %c0_5] : memref<3x8xf32, #tpu.memory_space<smem>>
    %12 = vector.broadcast %11 : f32 to vector<14x14xf32>
    %13 = arith.mulf %5, %12 : vector<14x14xf32>
    %14 = arith.addf %10, %13 : vector<14x14xf32>
    %c2 = arith.constant 2 : index
    %c0_6 = arith.constant 0 : index
    %15 = memref.load %arg2[%c2, %c0_6] : memref<3x8xf32, #tpu.memory_space<smem>>
    %16 = vector.broadcast %15 : f32 to vector<14x14xf32>
    %17 = arith.mulf %7, %16 : vector<14x14xf32>
    %18 = arith.addf %14, %17 : vector<14x14xf32>
    %c0_7 = arith.constant 0 : index
    %19 = memref.load %arg3[%c0_7] : memref<8xf32, #tpu.memory_space<smem>>
    %20 = vector.broadcast %19 : f32 to vector<14x14xf32>
    %21 = arith.addf %18, %20 : vector<14x14xf32>
    %cst = arith.constant 2.500000e-01 : f32
    %22 = vector.broadcast %cst : f32 to vector<14x14xf32>
    %23 = arith.mulf %21, %22 : vector<14x14xf32>
    %24 = arith.maximumf %21, %23 : vector<14x14xf32>
    %c0_8 = arith.constant 0 : index
    %c0_9 = arith.constant 0 : index
    %c0_10 = arith.constant 0 : index
    %c0_11 = arith.constant 0 : index
    %25 = vector.load %arg4[%c0_8, %c0_9, %c0_10, %c0_11] : memref<1x8x14x14xf32, #tpu.memory_space<vmem>>, vector<1x1x14x14xf32>
    %26 = vector.shape_cast %25 : vector<1x1x14x14xf32> to vector<14x14xf32>
    %27 = vector.shape_cast %24 : vector<14x14xf32> to vector<1x1x14x14xf32>
    tpu.vector_store %arg4[%c0_8, %c0_9, %c0_10, %c0_11], %27 {strides = array<i32>} : memref<1x8x14x14xf32, #tpu.memory_space<vmem>>, vector<1x1x14x14xf32>,
    %c0_12 = arith.constant 0 : index
    %c1_13 = arith.constant 1 : index
    %28 = memref.load %arg2[%c0_12, %c1_13] : memref<3x8xf32, #tpu.memory_space<smem>>
    %29 = vector.broadcast %28 : f32 to vector<14x14xf32>
    %30 = arith.mulf %3, %29 : vector<14x14xf32>
    %c1_14 = arith.constant 1 : index
    %c1_15 = arith.constant 1 : index
    %31 = memref.load %arg2[%c1_14, %c1_15] : memref<3x8xf32, #tpu.memory_space<smem>>
    %32 = vector.broadcast %31 : f32 to vector<14x14xf32>
    %33 = arith.mulf %5, %32 : vector<14x14xf32>
    %34 = arith.addf %30, %33 : vector<14x14xf32>
    %c2_16 = arith.constant 2 : index
    %c1_17 = arith.constant 1 : index
    %35 = memref.load %arg2[%c2_16, %c1_17] : memref<3x8xf32, #tpu.memory_space<smem>>
    %36 = vector.broadcast %35 : f32 to vector<14x14xf32>
    %37 = arith.mulf %7, %36 : vector<14x14xf32>
    %38 = arith.addf %34, %37 : vector<14x14xf32>
    %c1_18 = arith.constant 1 : index
    %39 = memref.load %arg3[%c1_18] : memref<8xf32, #tpu.memory_space<smem>>
    %40 = vector.broadcast %39 : f32 to vector<14x14xf32>
    %41 = arith.addf %38, %40 : vector<14x14xf32>
    %cst_19 = arith.constant 2.500000e-01 : f32
    %42 = vector.broadcast %cst_19 : f32 to vector<14x14xf32>
    %43 = arith.mulf %41, %42 : vector<14x14xf32>
    %44 = arith.maximumf %41, %43 : vector<14x14xf32>
    %c0_20 = arith.constant 0 : index
    %c1_21 = arith.constant 1 : index
    %c0_22 = arith.constant 0 : index
    %c0_23 = arith.constant 0 : index
    %45 = vector.load %arg4[%c0_20, %c1_21, %c0_22, %c0_23] : memref<1x8x14x14xf32, #tpu.memory_space<vmem>>, vector<1x1x14x14xf32>
    %46 = vector.shape_cast %45 : vector<1x1x14x14xf32> to vector<14x14xf32>
    %47 = vector.shape_cast %44 : vector<14x14xf32> to vector<1x1x14x14xf32>
    tpu.vector_store %arg4[%c0_20, %c1_21, %c0_22, %c0_23], %47 {strides = array<i32>} : memref<1x8x14x14xf32, #tpu.memory_space<vmem>>, vector<1x1x14x14xf32>,
    %c0_24 = arith.constant 0 : index
    %c2_25 = arith.constant 2 : index
    %48 = memref.load %arg2[%c0_24, %c2_25] : memref<3x8xf32, #tpu.memory_space<smem>>
    %49 = vector.broadcast %48 : f32 to vector<14x14xf32>
    %50 = arith.mulf %3, %49 : vector<14x14xf32>
    %c1_26 = arith.constant 1 : index
    %c2_27 = arith.constant 2 : index
    %51 = memref.load %arg2[%c1_26, %c2_27] : memref<3x8xf32, #tpu.memory_space<smem>>
    %52 = vector.broadcast %51 : f32 to vector<14x14xf32>
    %53 = arith.mulf %5, %52 : vector<14x14xf32>
    %54 = arith.addf %50, %53 : vector<14x14xf32>
    %c2_28 = arith.constant 2 : index
    %c2_29 = arith.constant 2 : index
    %55 = memref.load %arg2[%c2_28, %c2_29] : memref<3x8xf32, #tpu.memory_space<smem>>
    %56 = vector.broadcast %55 : f32 to vector<14x14xf32>
    %57 = arith.mulf %7, %56 : vector<14x14xf32>
    %58 = arith.addf %54, %57 : vector<14x14xf32>
    %c2_30 = arith.constant 2 : index
    %59 = memref.load %arg3[%c2_30] : memref<8xf32, #tpu.memory_space<smem>>
    %60 = vector.broadcast %59 : f32 to vector<14x14xf32>
    %61 = arith.addf %58, %60 : vector<14x14xf32>
    %cst_31 = arith.constant 2.500000e-01 : f32
    %62 = vector.broadcast %cst_31 : f32 to vector<14x14xf32>
    %63 = arith.mulf %61, %62 : vector<14x14xf32>
    %64 = arith.maximumf %61, %63 : vector<14x14xf32>
    %c0_32 = arith.constant 0 : index
    %c2_33 = arith.constant 2 : index
    %c0_34 = arith.constant 0 : index
    %c0_35 = arith.constant 0 : index
    %65 = vector.load %arg4[%c0_32, %c2_33, %c0_34, %c0_35] : memref<1x8x14x14xf32, #tpu.memory_space<vmem>>, vector<1x1x14x14xf32>
    %66 = vector.shape_cast %65 : vector<1x1x14x14xf32> to vector<14x14xf32>
    %67 = vector.shape_cast %64 : vector<14x14xf32> to vector<1x1x14x14xf32>
    tpu.vector_store %arg4[%c0_32, %c2_33, %c0_34, %c0_35], %67 {strides = array<i32>} : memref<1x8x14x14xf32, #tpu.memory_space<vmem>>, vector<1x1x14x14xf32>,
    %c0_36 = arith.constant 0 : index
    %c3 = arith.constant 3 : index
    %68 = memref.load %arg2[%c0_36, %c3] : memref<3x8xf32, #tpu.memory_space<smem>>
    %69 = vector.broadcast %68 : f32 to vector<14x14xf32>
    %70 = arith.mulf %3, %69 : vector<14x14xf32>
    %c1_37 = arith.constant 1 : index
    %c3_38 = arith.constant 3 : index
    %71 = memref.load %arg2[%c1_37, %c3_38] : memref<3x8xf32, #tpu.memory_space<smem>>
    %72 = vector.broadcast %71 : f32 to vector<14x14xf32>
    %73 = arith.mulf %5, %72 : vector<14x14xf32>
    %74 = arith.addf %70, %73 : vector<14x14xf32>
    %c2_39 = arith.constant 2 : index
    %c3_40 = arith.constant 3 : index
    %75 = memref.load %arg2[%c2_39, %c3_40] : memref<3x8xf32, #tpu.memory_space<smem>>
    %76 = vector.broadcast %75 : f32 to vector<14x14xf32>
    %77 = arith.mulf %7, %76 : vector<14x14xf32>
    %78 = arith.addf %74, %77 : vector<14x14xf32>
    %c3_41 = arith.constant 3 : index
    %79 = memref.load %arg3[%c3_41] : memref<8xf32, #tpu.memory_space<smem>>
    %80 = vector.broadcast %79 : f32 to vector<14x14xf32>
    %81 = arith.addf %78, %80 : vector<14x14xf32>
    %cst_42 = arith.constant 2.500000e-01 : f32
    %82 = vector.broadcast %cst_42 : f32 to vector<14x14xf32>
    %83 = arith.mulf %81, %82 : vector<14x14xf32>
    %84 = arith.maximumf %81, %83 : vector<14x14xf32>
    %c0_43 = arith.constant 0 : index
    %c3_44 = arith.constant 3 : index
    %c0_45 = arith.constant 0 : index
    %c0_46 = arith.constant 0 : index
    %85 = vector.load %arg4[%c0_43, %c3_44, %c0_45, %c0_46] : memref<1x8x14x14xf32, #tpu.memory_space<vmem>>, vector<1x1x14x14xf32>
    %86 = vector.shape_cast %85 : vector<1x1x14x14xf32> to vector<14x14xf32>
    %87 = vector.shape_cast %84 : vector<14x14xf32> to vector<1x1x14x14xf32>
    tpu.vector_store %arg4[%c0_43, %c3_44, %c0_45, %c0_46], %87 {strides = array<i32>} : memref<1x8x14x14xf32, #tpu.memory_space<vmem>>, vector<1x1x14x14xf32>,
    %c0_47 = arith.constant 0 : index
    %c4 = arith.constant 4 : index
    %88 = memref.load %arg2[%c0_47, %c4] : memref<3x8xf32, #tpu.memory_space<smem>>
    %89 = vector.broadcast %88 : f32 to vector<14x14xf32>
    %90 = arith.mulf %3, %89 : vector<14x14xf32>
    %c1_48 = arith.constant 1 : index
    %c4_49 = arith.constant 4 : index
    %91 = memref.load %arg2[%c1_48, %c4_49] : memref<3x8xf32, #tpu.memory_space<smem>>
    %92 = vector.broadcast %91 : f32 to vector<14x14xf32>
    %93 = arith.mulf %5, %92 : vector<14x14xf32>
    %94 = arith.addf %90, %93 : vector<14x14xf32>
    %c2_50 = arith.constant 2 : index
    %c4_51 = arith.constant 4 : index
    %95 = memref.load %arg2[%c2_50, %c4_51] : memref<3x8xf32, #tpu.memory_space<smem>>
    %96 = vector.broadcast %95 : f32 to vector<14x14xf32>
    %97 = arith.mulf %7, %96 : vector<14x14xf32>
    %98 = arith.addf %94, %97 : vector<14x14xf32>
    %c4_52 = arith.constant 4 : index
    %99 = memref.load %arg3[%c4_52] : memref<8xf32, #tpu.memory_space<smem>>
    %100 = vector.broadcast %99 : f32 to vector<14x14xf32>
    %101 = arith.addf %98, %100 : vector<14x14xf32>
    %cst_53 = arith.constant 2.500000e-01 : f32
    %102 = vector.broadcast %cst_53 : f32 to vector<14x14xf32>
    %103 = arith.mulf %101, %102 : vector<14x14xf32>
    %104 = arith.maximumf %101, %103 : vector<14x14xf32>
    %c0_54 = arith.constant 0 : index
    %c4_55 = arith.constant 4 : index
    %c0_56 = arith.constant 0 : index
    %c0_57 = arith.constant 0 : index
    %105 = vector.load %arg4[%c0_54, %c4_55, %c0_56, %c0_57] : memref<1x8x14x14xf32, #tpu.memory_space<vmem>>, vector<1x1x14x14xf32>
    %106 = vector.shape_cast %105 : vector<1x1x14x14xf32> to vector<14x14xf32>
    %107 = vector.shape_cast %104 : vector<14x14xf32> to vector<1x1x14x14xf32>
    tpu.vector_store %arg4[%c0_54, %c4_55, %c0_56, %c0_57], %107 {strides = array<i32>} : memref<1x8x14x14xf32, #tpu.memory_space<vmem>>, vector<1x1x14x14xf32>,
    %c0_58 = arith.constant 0 : index
    %c5 = arith.constant 5 : index
    %108 = memref.load %arg2[%c0_58, %c5] : memref<3x8xf32, #tpu.memory_space<smem>>
    %109 = vector.broadcast %108 : f32 to vector<14x14xf32>
    %110 = arith.mulf %3, %109 : vector<14x14xf32>
    %c1_59 = arith.constant 1 : index
    %c5_60 = arith.constant 5 : index
    %111 = memref.load %arg2[%c1_59, %c5_60] : memref<3x8xf32, #tpu.memory_space<smem>>
    %112 = vector.broadcast %111 : f32 to vector<14x14xf32>
    %113 = arith.mulf %5, %112 : vector<14x14xf32>
    %114 = arith.addf %110, %113 : vector<14x14xf32>
    %c2_61 = arith.constant 2 : index
    %c5_62 = arith.constant 5 : index
    %115 = memref.load %arg2[%c2_61, %c5_62] : memref<3x8xf32, #tpu.memory_space<smem>>
    %116 = vector.broadcast %115 : f32 to vector<14x14xf32>
    %117 = arith.mulf %7, %116 : vector<14x14xf32>
    %118 = arith.addf %114, %117 : vector<14x14xf32>
    %c5_63 = arith.constant 5 : index
    %119 = memref.load %arg3[%c5_63] : memref<8xf32, #tpu.memory_space<smem>>
    %120 = vector.broadcast %119 : f32 to vector<14x14xf32>
    %121 = arith.addf %118, %120 : vector<14x14xf32>
    %cst_64 = arith.constant 2.500000e-01 : f32
    %122 = vector.broadcast %cst_64 : f32 to vector<14x14xf32>
    %123 = arith.mulf %121, %122 : vector<14x14xf32>
    %124 = arith.maximumf %121, %123 : vector<14x14xf32>
    %c0_65 = arith.constant 0 : index
    %c5_66 = arith.constant 5 : index
    %c0_67 = arith.constant 0 : index
    %c0_68 = arith.constant 0 : index
    %125 = vector.load %arg4[%c0_65, %c5_66, %c0_67, %c0_68] : memref<1x8x14x14xf32, #tpu.memory_space<vmem>>, vector<1x1x14x14xf32>
    %126 = vector.shape_cast %125 : vector<1x1x14x14xf32> to vector<14x14xf32>
    %127 = vector.shape_cast %124 : vector<14x14xf32> to vector<1x1x14x14xf32>
    tpu.vector_store %arg4[%c0_65, %c5_66, %c0_67, %c0_68], %127 {strides = array<i32>} : memref<1x8x14x14xf32, #tpu.memory_space<vmem>>, vector<1x1x14x14xf32>,
    %c0_69 = arith.constant 0 : index
    %c6 = arith.constant 6 : index
    %128 = memref.load %arg2[%c0_69, %c6] : memref<3x8xf32, #tpu.memory_space<smem>>
    %129 = vector.broadcast %128 : f32 to vector<14x14xf32>
    %130 = arith.mulf %3, %129 : vector<14x14xf32>
    %c1_70 = arith.constant 1 : index
    %c6_71 = arith.constant 6 : index
    %131 = memref.load %arg2[%c1_70, %c6_71] : memref<3x8xf32, #tpu.memory_space<smem>>
    %132 = vector.broadcast %131 : f32 to vector<14x14xf32>
    %133 = arith.mulf %5, %132 : vector<14x14xf32>
    %134 = arith.addf %130, %133 : vector<14x14xf32>
    %c2_72 = arith.constant 2 : index
    %c6_73 = arith.constant 6 : index
    %135 = memref.load %arg2[%c2_72, %c6_73] : memref<3x8xf32, #tpu.memory_space<smem>>
    %136 = vector.broadcast %135 : f32 to vector<14x14xf32>
    %137 = arith.mulf %7, %136 : vector<14x14xf32>
    %138 = arith.addf %134, %137 : vector<14x14xf32>
    %c6_74 = arith.constant 6 : index
    %139 = memref.load %arg3[%c6_74] : memref<8xf32, #tpu.memory_space<smem>>
    %140 = vector.broadcast %139 : f32 to vector<14x14xf32>
    %141 = arith.addf %138, %140 : vector<14x14xf32>
    %cst_75 = arith.constant 2.500000e-01 : f32
    %142 = vector.broadcast %cst_75 : f32 to vector<14x14xf32>
    %143 = arith.mulf %141, %142 : vector<14x14xf32>
    %144 = arith.maximumf %141, %143 : vector<14x14xf32>
    %c0_76 = arith.constant 0 : index
    %c6_77 = arith.constant 6 : index
    %c0_78 = arith.constant 0 : index
    %c0_79 = arith.constant 0 : index
    %145 = vector.load %arg4[%c0_76, %c6_77, %c0_78, %c0_79] : memref<1x8x14x14xf32, #tpu.memory_space<vmem>>, vector<1x1x14x14xf32>
    %146 = vector.shape_cast %145 : vector<1x1x14x14xf32> to vector<14x14xf32>
    %147 = vector.shape_cast %144 : vector<14x14xf32> to vector<1x1x14x14xf32>
    tpu.vector_store %arg4[%c0_76, %c6_77, %c0_78, %c0_79], %147 {strides = array<i32>} : memref<1x8x14x14xf32, #tpu.memory_space<vmem>>, vector<1x1x14x14xf32>,
    %c0_80 = arith.constant 0 : index
    %c7 = arith.constant 7 : index
    %148 = memref.load %arg2[%c0_80, %c7] : memref<3x8xf32, #tpu.memory_space<smem>>
    %149 = vector.broadcast %148 : f32 to vector<14x14xf32>
    %150 = arith.mulf %3, %149 : vector<14x14xf32>
    %c1_81 = arith.constant 1 : index
    %c7_82 = arith.constant 7 : index
    %151 = memref.load %arg2[%c1_81, %c7_82] : memref<3x8xf32, #tpu.memory_space<smem>>
    %152 = vector.broadcast %151 : f32 to vector<14x14xf32>
    %153 = arith.mulf %5, %152 : vector<14x14xf32>
    %154 = arith.addf %150, %153 : vector<14x14xf32>
    %c2_83 = arith.constant 2 : index
    %c7_84 = arith.constant 7 : index
    %155 = memref.load %arg2[%c2_83, %c7_84] : memref<3x8xf32, #tpu.memory_space<smem>>
    %156 = vector.broadcast %155 : f32 to vector<14x14xf32>
    %157 = arith.mulf %7, %156 : vector<14x14xf32>
    %158 = arith.addf %154, %157 : vector<14x14xf32>
    %c7_85 = arith.constant 7 : index
    %159 = memref.load %arg3[%c7_85] : memref<8xf32, #tpu.memory_space<smem>>
    %160 = vector.broadcast %159 : f32 to vector<14x14xf32>
    %161 = arith.addf %158, %160 : vector<14x14xf32>
    %cst_86 = arith.constant 2.500000e-01 : f32
    %162 = vector.broadcast %cst_86 : f32 to vector<14x14xf32>
    %163 = arith.mulf %161, %162 : vector<14x14xf32>
    %164 = arith.maximumf %161, %163 : vector<14x14xf32>
    %c0_87 = arith.constant 0 : index
    %c7_88 = arith.constant 7 : index
    %c0_89 = arith.constant 0 : index
    %c0_90 = arith.constant 0 : index
    %165 = vector.load %arg4[%c0_87, %c7_88, %c0_89, %c0_90] : memref<1x8x14x14xf32, #tpu.memory_space<vmem>>, vector<1x1x14x14xf32>
    %166 = vector.shape_cast %165 : vector<1x1x14x14xf32> to vector<14x14xf32>
    %167 = vector.shape_cast %164 : vector<14x14xf32> to vector<1x1x14x14xf32>
    tpu.vector_store %arg4[%c0_87, %c7_88, %c0_89, %c0_90], %167 {strides = array<i32>} : memref<1x8x14x14xf32, #tpu.memory_space<vmem>>, vector<1x1x14x14xf32>,
    return
  }
  func.func @transform_0(%arg0: i32) -> (i32, i32, i32, i32) {
    %c0_i32 = arith.constant 0 : i32
    %c0_i32_0 = arith.constant 0 : i32
    %c0_i32_1 = arith.constant 0 : i32
    %c0_i32_2 = arith.constant 0 : i32
    return %arg0, %c0_i32, %c0_i32_0, %c0_i32_1 : i32, i32, i32, i32
  }
  func.func @transform_1(%arg0: i32) -> (i32, i32) {
    %c0_i32 = arith.constant 0 : i32
    %c0_i32_0 = arith.constant 0 : i32
    %c0_i32_1 = arith.constant 0 : i32
    return %c0_i32, %c0_i32_0 : i32, i32
  }
  func.func @transform_2(%arg0: i32) -> i32 {
    %c0_i32 = arith.constant 0 : i32
    %c0_i32_0 = arith.constant 0 : i32
    return %c0_i32 : i32
  }
  func.func @transform_3(%arg0: i32) -> (i32, i32, i32, i32) {
    %c0_i32 = arith.constant 0 : i32
    %c0_i32_0 = arith.constant 0 : i32
    %c0_i32_1 = arith.constant 0 : i32
    %c0_i32_2 = arith.constant 0 : i32
    return %arg0, %c0_i32, %c0_i32_0, %c0_i32_1 : i32, i32, i32, i32
  }
}

</mosaic_0001>

<llo_original>
// kernel: model_forward.1
$region0: #{model_forward.1}
  #allocation0 [shape = 'u32[]', space=smem, size = 0x4, offset = 0x4, fixed_abs, tag = 'smem constant byte address 0x4 - core index']
  #allocation1 [shape = 'u32[72,128]{1,0:T(1,128)}', space=vmem, size = 0x9000, scoped, tag = 'internal scratch']
  %s0 = inlined_call_operand.hbm [shape: f32[2,3,16,16], index: 0, kind: input, shape index: {}]
  %s1 = inlined_call_operand.vmem [shape: f32[3,8], index: 1, kind: input, shape index: {}]
  %s2 = inlined_call_operand.vmem [shape: f32[8], index: 2, kind: input, shape index: {}]
  %s3 = inlined_call_operand.vmem [shape: f32[2,8,14,14], index: 3, kind: output, shape index: {}]
  %s4 = sld [smem:[#allocation0]]
  $region57: #{model_forward.1} parent=0
    _
  %s6 = ssub.s32 1, %s4
  %s7 = scalar_select 0, %s6, %s4
  $region1: #{model_forward.1} parent=0
    #allocation2 [shape = 'u8[49152]{0}', space=vmem, size = 0xc000, scoped, tag = 'input window, operand 0']
    #allocation3 [shape = 's32[2]{0}', space=sflag, size = 0x8, scoped, tag = 'scoped memory for model_forward.1']
    #allocation4 [shape = 's32[2]{0}', space=sflag, size = 0x8, scoped, tag = 'scoped memory for model_forward.1']
    #allocation5 [shape = 'u8[2048]{0}', space=smem, size = 0x800, scoped, tag = 'input window, operand 1, single buffered']
    #allocation6 [shape = 'u8[512]{0}', space=smem, size = 0x200, scoped, tag = 'input window, operand 2, single buffered']
    #allocation7 [shape = 's32[1]{0}', space=sflag, size = 0x4, scoped, tag = 'scoped memory for model_forward.1']
    %8 = vsyncpa [#allocation3], 0
    %s9 = scalar_lea.sflag [#allocation3], 1
    %10 = vsyncpa %s9, 0
    %11 = vsyncpa [#allocation4], 0
    %12 = vsyncpa [#allocation7], 0
    loop: start=0, step=1, limit=4
    $region2: #{model_forward.1} parent=1 // loop_pre_header
      _
    $region3: #{model_forward.1} parent=1 // loop_header
      %s14 = sphi 0, %s18
      %p15 = scmp.ge.s32.totalorder %s14, 4
      %s24 = sphi 0, %s26
      %s27 = sphi 0, %s24
      %s28 = sphi 0, %s27
      %s44 = sphi 0, %s28
      %s48 = sphi 0, %s48
      %s50 = sphi 0, %s48
      %s51 = sphi 0, %s50
      %s65 = sphi 0, %s51
      %s69 = sphi 0, %s69
      %s71 = sphi 0, %s69
      %s72 = sphi 0, %s71
      %s86 = sphi 0, %s72
      %s92 = sphi 0, %s94
      %s95 = sphi 0, %s92
      %s96 = sphi 0, %s95
      %s112 = sphi 0, %s96
    $region4: #{model_forward.1} parent=1 // loop_header_branch
      %17 = sbr.rel (%p15) target = $region8
    $region5: #{model_forward.1} parent=1 // loop_body
      %s19 = ssub.s32 %s14, 1
      %s20 = ssub.s32 %s14, 2
      %s21 = sadd.s32 %s14, 1
      %s22 = ssub.s32 %s14, %s21
      %p23 = scmp.eq.s32.totalorder %s22, 0
      %s25 = sadd.s32 %s24, 1
      %s26 = scalar_select %p23, %s24, %s25
      %p29 = pneg %p23
      %p30 = scmp.eq.s32.totalorder %s14, 1
      %p31 = por %p29, %p30
      %p32 = scmp.ne.s32.totalorder %s24, %s27
      %p33 = scmp.eq.s32.totalorder %s14, 0
      %p34 = por %p32, %p33
      %p35 = scmp.ne.s32.totalorder %s24, %s27
      %p36 = scmp.eq.s32.totalorder %s19, 1
      %p37 = por %p35, %p36
      %p38 = scmp.ne.s32.totalorder %s27, %s28
      %p39 = scmp.eq.s32.totalorder %s19, 0
      %p40 = por %p38, %p39
      %p41 = scmp.ne.s32.totalorder %s27, %s28
      %p42 = scmp.eq.s32.totalorder %s20, 1
      %p43 = por %p41, %p42
      %p45 = scmp.ne.s32.totalorder %s28, %s44
      %p46 = scmp.eq.s32.totalorder %s20, 0
      %p47 = por %p45, %p46
      %s49 = sadd.s32 %s48, 1
      %p52 = scmp.eq.s32.totalorder %s14, 1
      %p53 = scmp.ne.s32.totalorder %s48, %s50
      %p54 = scmp.eq.s32.totalorder %s14, 0
      %p55 = por %p53, %p54
      %p56 = scmp.ne.s32.totalorder %s48, %s50
      %p57 = scmp.eq.s32.totalorder %s19, 1
      %p58 = por %p56, %p57
      %p59 = scmp.ne.s32.totalorder %s50, %s51
      %p60 = scmp.eq.s32.totalorder %s19, 0
      %p61 = por %p59, %p60
      %p62 = scmp.ne.s32.totalorder %s50, %s51
      %p63 = scmp.eq.s32.totalorder %s20, 1
      %p64 = por %p62, %p63
      %p66 = scmp.ne.s32.totalorder %s51, %s65
      %p67 = scmp.eq.s32.totalorder %s20, 0
      %p68 = por %p66, %p67
      %s70 = sadd.s32 %s69, 1
      %p73 = scmp.eq.s32.totalorder %s14, 1
      %p74 = scmp.ne.s32.totalorder %s69, %s71
      %p75 = scmp.eq.s32.totalorder %s14, 0
      %p76 = por %p74, %p75
      %p77 = scmp.ne.s32.totalorder %s69, %s71
      %p78 = scmp.eq.s32.totalorder %s19, 1
      %p79 = por %p77, %p78
      %p80 = scmp.ne.s32.totalorder %s71, %s72
      %p81 = scmp.eq.s32.totalorder %s19, 0
      %p82 = por %p80, %p81
      %p83 = scmp.ne.s32.totalorder %s71, %s72
      %p84 = scmp.eq.s32.totalorder %s20, 1
      %p85 = por %p83, %p84
      %p87 = scmp.ne.s32.totalorder %s72, %s86
      %p88 = scmp.eq.s32.totalorder %s20, 0
      %p89 = por %p87, %p88
      %s90 = ssub.s32 %s14, %s21
      %p91 = scmp.eq.s32.totalorder %s90, 0
      %s93 = sadd.s32 %s92, 1
      %s94 = scalar_select %p91, %s92, %s93
      %p97 = pneg %p91
      %p98 = scmp.eq.s32.totalorder %s14, 1
      %p99 = por %p97, %p98
      %p100 = scmp.ne.s32.totalorder %s92, %s95
      %p101 = scmp.eq.s32.totalorder %s14, 0
      %p102 = por %p100, %p101
      %p103 = scmp.ne.s32.totalorder %s92, %s95
      %p104 = scmp.eq.s32.totalorder %s19, 1
      %p105 = por %p103, %p104
      %p106 = scmp.ne.s32.totalorder %s95, %s96
      %p107 = scmp.eq.s32.totalorder %s19, 0
      %p108 = por %p106, %p107
      %p109 = scmp.ne.s32.totalorder %s95, %s96
      %p110 = scmp.eq.s32.totalorder %s20, 1
      %p111 = por %p109, %p110
      %p113 = scmp.ne.s32.totalorder %s96, %s112
      %p114 = scmp.eq.s32.totalorder %s20, 0
      %p115 = por %p113, %p114
      %p116 = scmp.le.s32.totalorder 1, %s14
      %p117 = scmp.lt.s32.totalorder %s14, 3
      %p118 = pnand %p116, %p117
      %p119 = pneg %p118
      // Predicated region
      $region9: #{model_forward.1} parent=5 // pred_check
        _
      $region10: #{model_forward.1} parent=5 // pred_check_branch
        %121 = sbr.rel (%p118) target = $region12
      $region11: #{model_forward.1} parent=5 // pred_region
        %s122 = ssub.s32 %s14, 1
        // Predicated region
        $region13: #{model_forward.1} parent=11 // pred_check
          %p123 = pneg %p61
        $region14: #{model_forward.1} parent=11 // pred_check_branch
          %125 = sbr.rel (%p123) target = $region16
        $region15: #{model_forward.1} parent=11 // pred_region
          %127 = vsyncadd [#allocation4], 0
          %s129 = sshll.u32 %s1, 4
          %s130 = int_to_ptr.vmem [resolvable:$true] %s129
          %132 = dma.vmem_to_smem %s130, 64, [#allocation5], [#allocation4]
        $region16: #{model_forward.1} parent=11 // pred_fallthru
          _
        // Predicated region
        $region17: #{model_forward.1} parent=11 // pred_check
          %p133 = pneg %p82
        $region18: #{model_forward.1} parent=11 // pred_check_branch
          %135 = sbr.rel (%p133) target = $region20
        $region19: #{model_forward.1} parent=11 // pred_region
          %137 = vsyncadd [#allocation7], 0
          %s139 = sshll.u32 %s2, 4
          %s140 = int_to_ptr.vmem [resolvable:$true] %s139
          %142 = dma.vmem_to_smem %s140, 16, [#allocation6], [#allocation7]
        $region20: #{model_forward.1} parent=11 // pred_fallthru
          _
      $region12: #{model_forward.1} parent=5 // pred_fallthru
        _
      %p143 = scmp.lt.s32.totalorder %s14, 2
      // Predicated region
      $region21: #{model_forward.1} parent=5 // pred_check
        %p144 = pneg %p143
      $region22: #{model_forward.1} parent=5 // pred_check_branch
        %146 = sbr.rel (%p144) target = $region24
      $region23: #{model_forward.1} parent=5 // pred_region
        // Predicated region
        $region25: #{model_forward.1} parent=23 // pred_check
          %p147 = pneg %p34
        $region26: #{model_forward.1} parent=23 // pred_check_branch
          %149 = sbr.rel (%p147) target = $region28
        $region27: #{model_forward.1} parent=23 // pred_region
          %s150 = sand.u32 %s24, 1
          %s151 = scalar_lea.sflag [#allocation3], %s150
          %s152 = sand.u32 %s24, 1
          %s153 = smul.addr %s152, 48
          %s154 = scalar_lea.vmem [#allocation2], %s153
          %156 = vsyncadd %s151, 0
          %s157 = smul.addr %s14, 6
          %s158 = smul.addr %s157, 8
          %s159 = scalar_lea.hbm %s0, %s158
          %s160 = sshll.u32 %s159, 4
          %s161 = int_to_ptr.hbm [resolvable:$true] %s160
          %s162 = sshll.u32 %s154, 4
          %s163 = int_to_ptr.vmem [resolvable:$true] %s162
          %168 = dma.hbm_to_vmem [thread:$0]  %s161, 768, %s163, %s151, 128, 128, 8
        $region28: #{model_forward.1} parent=23 // pred_fallthru
          _
      $region24: #{model_forward.1} parent=5 // pred_fallthru
        _
      %p169 = scmp.le.s32.totalorder 1, %s14
      %p170 = scmp.lt.s32.totalorder %s14, 3
      %p171 = pnand %p169, %p170
      %p172 = pneg %p171
      // Predicated region
      $region29: #{model_forward.1} parent=5 // pred_check
        _
      $region30: #{model_forward.1} parent=5 // pred_check_branch
        %174 = sbr.rel (%p171) target = $region32
      $region31: #{model_forward.1} parent=5 // pred_region
        %s175 = ssub.s32 %s14, 1
        %s176 = sand.u32 %s27, 1
        %s177 = scalar_lea.sflag [#allocation3], %s176
        %s178 = sand.u32 %s27, 1
        %s179 = smul.addr %s178, 48
        %s180 = scalar_lea.vmem [#allocation2], %s179
        // Predicated region
        $region33: #{model_forward.1} parent=31 // pred_check
          %p181 = pneg %p40
        $region34: #{model_forward.1} parent=31 // pred_check_branch
          %183 = sbr.rel (%p181) target = $region36
        $region35: #{model_forward.1} parent=31 // pred_region
          %185 = dma.done %s177, 768
        $region36: #{model_forward.1} parent=31 // pred_fallthru
          _
        // Predicated region
        $region37: #{model_forward.1} parent=31 // pred_check
          %p186 = pneg %p61
        $region38: #{model_forward.1} parent=31 // pred_check_branch
          %188 = sbr.rel (%p186) target = $region40
        $region39: #{model_forward.1} parent=31 // pred_region
          %190 = dma.done [#allocation4], 64
        $region40: #{model_forward.1} parent=31 // pred_fallthru
          _
        // Predicated region
        $region41: #{model_forward.1} parent=31 // pred_check
          %p191 = pneg %p82
        $region42: #{model_forward.1} parent=31 // pred_check_branch
          %193 = sbr.rel (%p191) target = $region44
        $region43: #{model_forward.1} parent=31 // pred_region
          %195 = dma.done [#allocation7], 16
        $region44: #{model_forward.1} parent=31 // pred_fallthru
          _
        %196 = sfence
        %s197 = sand.u32 %s27, 1
        %s198 = scalar_lea.sflag [#allocation3], %s197
        %s199 = sand.u32 %s27, 1
        %s200 = smul.addr %s199, 48
        %s201 = scalar_lea.vmem [#allocation2], %s200
        %p202 = pneg %p40
        %p203 = pneg %p37
        %p204 = pneg %p61
        %p205 = pneg %p58
        %p206 = pneg %p82
        %p207 = pneg %p79
        %p208 = pneg %p108
        %p209 = pneg %p105
        %p210 = scmp.lt.s32.totalorder %s19, 1
        %s211 = scalar_select %p210, %s19, 1
        %s212 = smul.addr %s211, 16
        %s213 = smul.addr %s212, 8
        %s214 = scalar_lea.vmem %s3, %s213
        %p215 = scmp.lt.s32.totalorder %s19, 1
        %s216 = scalar_select %p215, %s19, 1
        %s217 = smul.addr %s216, 16
        %s218 = smul.addr %s217, 8
        %s219 = scalar_lea.vmem %s3, %s218
        %v220 = vld [vmem:[%s180] sm:$0xff]
        %v221 = vld [vmem:[%s180 + $0x8] sm:$0xff]
        %v222 = vld [vmem:[%s180 + $0x10] sm:$0xff]
        %v223 = vld [vmem:[%s180 + $0x18] sm:$0xff]
        %v224 = vld [vmem:[%s180 + $0x20] sm:$0xff]
        %v225 = vld [vmem:[%s180 + $0x28] sm:$0xff]
        %s226 = sld [smem:[#allocation5]]
        %v227 = vstv %s226
        %v228 = vmul.f32 %v220, %v227
        %v229 = vmul.f32 %v221, %v227
        %s230 = sld [smem:[#allocation5 + $0x80]]
        %v231 = vstv %s230
        %v232 = vmul.f32 %v222, %v231
        %v233 = vmul.f32 %v223, %v231
        %v234 = vadd.f32 %v228, %v232
        %v235 = vadd.f32 %v229, %v233
        %s236 = sld [smem:[#allocation5 + $0x100]]
        %v237 = vstv %s236
        %v238 = vmul.f32 %v224, %v237
        %v239 = vmul.f32 %v225, %v237
        %v240 = vadd.f32 %v234, %v238
        %v241 = vadd.f32 %v235, %v239
        %s242 = sld [smem:[#allocation6]]
        %v243 = vstv %s242
        %v244 = vadd.f32 %v240, %v243
        %v245 = vadd.f32 %v241, %v243
        %v246 = vmul.f32 %v244, 0.25
        %v247 = vmul.f32 %v245, 0.25
        %v248 = vmax.f32 %v244, %v246
        %v249 = vmax.f32 %v245, %v247
        %252 = vrot.lane.b32.xlu0 %v248, 127
        %v253 = vpop.permute.xlu0 %252
        %254 = vrot.lane.b32.xlu0 %v249, 127
        %v255 = vpop.permute.xlu0 %254
        %vm258 = vcmask 113665
        %259 = vst.msk [vmem:[%s219 - $0x1] sm:$0xfe] %vm258, %v253
        %vm260 = vcmask 112640
        %261 = vst.msk [vmem:[%s219 + $0x7] sm:$0x7f] %vm260, %v255
        %s262 = sld [smem:[#allocation5 + $0x1]]
        %v263 = vstv %s262
        %v264 = vmul.f32 %v220, %v263
        %v265 = vmul.f32 %v221, %v263
        %s266 = sld [smem:[#allocation5 + $0x81]]
        %v267 = vstv %s266
        %v268 = vmul.f32 %v222, %v267
        %v269 = vmul.f32 %v223, %v267
        %v270 = vadd.f32 %v264, %v268
        %v271 = vadd.f32 %v265, %v269
        %s272 = sld [smem:[#allocation5 + $0x101]]
        %v273 = vstv %s272
        %v274 = vmul.f32 %v224, %v273
        %v275 = vmul.f32 %v225, %v273
        %v276 = vadd.f32 %v270, %v274
        %v277 = vadd.f32 %v271, %v275
        %s278 = sld [smem:[#allocation6 + $0x1]]
        %v279 = vstv %s278
        %v280 = vadd.f32 %v276, %v279
        %v281 = vadd.f32 %v277, %v279
        %v282 = vmul.f32 %v280, 0.25
        %v283 = vmul.f32 %v281, 0.25
        %v284 = vmax.f32 %v280, %v282
        %v285 = vmax.f32 %v281, %v283
        %288 = vrot.lane.b32.xlu0 %v284, 127
        %v289 = vpop.permute.xlu0 %288
        %290 = vrot.lane.b32.xlu0 %v285, 127
        %v291 = vpop.permute.xlu0 %290
        %s294 = scalar_lea.vmem %s219, 16
        %295 = vst.msk [vmem:[%s294 - $0x1] sm:$0xfe] %vm258, %v289
        %296 = vst.msk [vmem:[%s294 + $0x7] sm:$0x7f] %vm260, %v291
        %s297 = sld [smem:[#allocation5 + $0x2]]
        %v298 = vstv %s297
        %v299 = vmul.f32 %v220, %v298
        %v300 = vmul.f32 %v221, %v298
        %s301 = sld [smem:[#allocation5 + $0x82]]
        %v302 = vstv %s301
        %v303 = vmul.f32 %v222, %v302
        %v304 = vmul.f32 %v223, %v302
        %v305 = vadd.f32 %v299, %v303
        %v306 = vadd.f32 %v300, %v304
        %s307 = sld [smem:[#allocation5 + $0x102]]
        %v308 = vstv %s307
        %v309 = vmul.f32 %v224, %v308
        %v310 = vmul.f32 %v225, %v308
        %v311 = vadd.f32 %v305, %v309
        %v312 = vadd.f32 %v306, %v310
        %s313 = sld [smem:[#allocation6 + $0x2]]
        %v314 = vstv %s313
        %v315 = vadd.f32 %v311, %v314
        %v316 = vadd.f32 %v312, %v314
        %v317 = vmul.f32 %v315, 0.25
        %v318 = vmul.f32 %v316, 0.25
        %v319 = vmax.f32 %v315, %v317
        %v320 = vmax.f32 %v316, %v318
        %323 = vrot.lane.b32.xlu0 %v319, 127
        %v324 = vpop.permute.xlu0 %323
        %325 = vrot.lane.b32.xlu0 %v320, 127
        %v326 = vpop.permute.xlu0 %325
        %s329 = scalar_lea.vmem %s219, 32
        %330 = vst.msk [vmem:[%s329 - $0x1] sm:$0xfe] %vm258, %v324
        %331 = vst.msk [vmem:[%s329 + $0x7] sm:$0x7f] %vm260, %v326
        %s332 = sld [smem:[#allocation5 + $0x3]]
        %v333 = vstv %s332
        %v334 = vmul.f32 %v220, %v333
        %v335 = vmul.f32 %v221, %v333
        %s336 = sld [smem:[#allocation5 + $0x83]]
        %v337 = vstv %s336
        %v338 = vmul.f32 %v222, %v337
        %v339 = vmul.f32 %v223, %v337
        %v340 = vadd.f32 %v334, %v338
        %v341 = vadd.f32 %v335, %v339
        %s342 = sld [smem:[#allocation5 + $0x103]]
        %v343 = vstv %s342
        %v344 = vmul.f32 %v224, %v343
        %v345 = vmul.f32 %v225, %v343
        %v346 = vadd.f32 %v340, %v344
        %v347 = vadd.f32 %v341, %v345
        %s348 = sld [smem:[#allocation6 + $0x3]]
        %v349 = vstv %s348
        %v350 = vadd.f32 %v346, %v349
        %v351 = vadd.f32 %v347, %v349
        %v352 = vmul.f32 %v350, 0.25
        %v353 = vmul.f32 %v351, 0.25
        %v354 = vmax.f32 %v350, %v352
        %v355 = vmax.f32 %v351, %v353
        %358 = vrot.lane.b32.xlu0 %v354, 127
        %v359 = vpop.permute.xlu0 %358
        %360 = vrot.lane.b32.xlu0 %v355, 127
        %v361 = vpop.permute.xlu0 %360
        %s364 = scalar_lea.vmem %s219, 48
        %365 = vst.msk [vmem:[%s364 - $0x1] sm:$0xfe] %vm258, %v359
        %366 = vst.msk [vmem:[%s364 + $0x7] sm:$0x7f] %vm260, %v361
        %s367 = sld [smem:[#allocation5 + $0x4]]
        %v368 = vstv %s367
        %v369 = vmul.f32 %v220, %v368
        %v370 = vmul.f32 %v221, %v368
        %s371 = sld [smem:[#allocation5 + $0x84]]
        %v372 = vstv %s371
        %v373 = vmul.f32 %v222, %v372
        %v374 = vmul.f32 %v223, %v372
        %v375 = vadd.f32 %v369, %v373
        %v376 = vadd.f32 %v370, %v374
        %s377 = sld [smem:[#allocation5 + $0x104]]
        %v378 = vstv %s377
        %v379 = vmul.f32 %v224, %v378
        %v380 = vmul.f32 %v225, %v378
        %v381 = vadd.f32 %v375, %v379
        %v382 = vadd.f32 %v376, %v380
        %s383 = sld [smem:[#allocation6 + $0x4]]
        %v384 = vstv %s383
        %v385 = vadd.f32 %v381, %v384
        %v386 = vadd.f32 %v382, %v384
        %v387 = vmul.f32 %v385, 0.25
        %v388 = vmul.f32 %v386, 0.25
        %v389 = vmax.f32 %v385, %v387
        %v390 = vmax.f32 %v386, %v388
        %393 = vrot.lane.b32.xlu0 %v389, 127
        %v394 = vpop.permute.xlu0 %393
        %395 = vrot.lane.b32.xlu0 %v390, 127
        %v396 = vpop.permute.xlu0 %395
        %s399 = scalar_lea.vmem %s219, 64
        %400 = vst.msk [vmem:[%s399 - $0x1] sm:$0xfe] %vm258, %v394
        %401 = vst.msk [vmem:[%s399 + $0x7] sm:$0x7f] %vm260, %v396
        %s402 = sld [smem:[#allocation5 + $0x5]]
        %v403 = vstv %s402
        %v404 = vmul.f32 %v220, %v403
        %v405 = vmul.f32 %v221, %v403
        %s406 = sld [smem:[#allocation5 + $0x85]]
        %v407 = vstv %s406
        %v408 = vmul.f32 %v222, %v407
        %v409 = vmul.f32 %v223, %v407
        %v410 = vadd.f32 %v404, %v408
        %v411 = vadd.f32 %v405, %v409
        %s412 = sld [smem:[#allocation5 + $0x105]]
        %v413 = vstv %s412
        %v414 = vmul.f32 %v224, %v413
        %v415 = vmul.f32 %v225, %v413
        %v416 = vadd.f32 %v410, %v414
        %v417 = vadd.f32 %v411, %v415
        %s418 = sld [smem:[#allocation6 + $0x5]]
        %v419 = vstv %s418
        %v420 = vadd.f32 %v416, %v419
        %v421 = vadd.f32 %v417, %v419
        %v422 = vmul.f32 %v420, 0.25
        %v423 = vmul.f32 %v421, 0.25
        %v424 = vmax.f32 %v420, %v422
        %v425 = vmax.f32 %v421, %v423
        %428 = vrot.lane.b32.xlu0 %v424, 127
        %v429 = vpop.permute.xlu0 %428
        %430 = vrot.lane.b32.xlu0 %v425, 127
        %v431 = vpop.permute.xlu0 %430
        %s434 = scalar_lea.vmem %s219, 80
        %435 = vst.msk [vmem:[%s434 - $0x1] sm:$0xfe] %vm258, %v429
        %436 = vst.msk [vmem:[%s434 + $0x7] sm:$0x7f] %vm260, %v431
        %s437 = sld [smem:[#allocation5 + $0x6]]
        %v438 = vstv %s437
        %v439 = vmul.f32 %v220, %v438
        %v440 = vmul.f32 %v221, %v438
        %s441 = sld [smem:[#allocation5 + $0x86]]
        %v442 = vstv %s441
        %v443 = vmul.f32 %v222, %v442
        %v444 = vmul.f32 %v223, %v442
        %v445 = vadd.f32 %v439, %v443
        %v446 = vadd.f32 %v440, %v444
        %s447 = sld [smem:[#allocation5 + $0x106]]
        %v448 = vstv %s447
        %v449 = vmul.f32 %v224, %v448
        %v450 = vmul.f32 %v225, %v448
        %v451 = vadd.f32 %v445, %v449
        %v452 = vadd.f32 %v446, %v450
        %s453 = sld [smem:[#allocation6 + $0x6]]
        %v454 = vstv %s453
        %v455 = vadd.f32 %v451, %v454
        %v456 = vadd.f32 %v452, %v454
        %v457 = vmul.f32 %v455, 0.25
        %v458 = vmul.f32 %v456, 0.25
        %v459 = vmax.f32 %v455, %v457
        %v460 = vmax.f32 %v456, %v458
        %463 = vrot.lane.b32.xlu0 %v459, 127
        %v464 = vpop.permute.xlu0 %463
        %465 = vrot.lane.b32.xlu0 %v460, 127
        %v466 = vpop.permute.xlu0 %465
        %s469 = scalar_lea.vmem %s219, 96
        %470 = vst.msk [vmem:[%s469 - $0x1] sm:$0xfe] %vm258, %v464
        %471 = vst.msk [vmem:[%s469 + $0x7] sm:$0x7f] %vm260, %v466
        %s472 = sld [smem:[#allocation5 + $0x7]]
        %v473 = vstv %s472
        %v474 = vmul.f32 %v220, %v473
        %v475 = vmul.f32 %v221, %v473
        %s476 = sld [smem:[#allocation5 + $0x87]]
        %v477 = vstv %s476
        %v478 = vmul.f32 %v222, %v477
        %v479 = vmul.f32 %v223, %v477
        %v480 = vadd.f32 %v474, %v478
        %v481 = vadd.f32 %v475, %v479
        %s482 = sld [smem:[#allocation5 + $0x107]]
        %v483 = vstv %s482
        %v484 = vmul.f32 %v224, %v483
        %v485 = vmul.f32 %v225, %v483
        %v486 = vadd.f32 %v480, %v484
        %v487 = vadd.f32 %v481, %v485
        %s488 = sld [smem:[#allocation6 + $0x7]]
        %v489 = vstv %s488
        %v490 = vadd.f32 %v486, %v489
        %v491 = vadd.f32 %v487, %v489
        %v492 = vmul.f32 %v490, 0.25
        %v493 = vmul.f32 %v491, 0.25
        %v494 = vmax.f32 %v490, %v492
        %v495 = vmax.f32 %v491, %v493
        %498 = vrot.lane.b32.xlu0 %v494, 127
        %v499 = vpop.permute.xlu0 %498
        %500 = vrot.lane.b32.xlu0 %v495, 127
        %v501 = vpop.permute.xlu0 %500
        %s504 = scalar_lea.vmem %s219, 112
        %505 = vst.msk [vmem:[%s504 - $0x1] sm:$0xfe] %vm258, %v499
        %506 = vst.msk [vmem:[%s504 + $0x7] sm:$0x7f] %vm260, %v501
        %p507 = scmp.lt.s32.totalorder %s19, 1
        %s508 = scalar_select %p507, %s19, 1
        %s509 = smul.addr %s508, 16
        %s510 = smul.addr %s509, 8
        %s511 = scalar_lea.vmem %s3, %s510
        // Predicated region
        $region45: #{model_forward.1} parent=31 // pred_check
          %p512 = pneg %p105
        $region46: #{model_forward.1} parent=31 // pred_check_branch
          %514 = sbr.rel (%p512) target = $region48
        $region47: #{model_forward.1} parent=31 // pred_region
          _
        $region48: #{model_forward.1} parent=31 // pred_fallthru
          _
      $region32: #{model_forward.1} parent=5 // pred_fallthru
        _
      %p515 = scmp.le.s32.totalorder 2, %s14
      // Predicated region
      $region49: #{model_forward.1} parent=5 // pred_check
        %p516 = pneg %p515
      $region50: #{model_forward.1} parent=5 // pred_check_branch
        %518 = sbr.rel (%p516) target = $region52
      $region51: #{model_forward.1} parent=5 // pred_region
        %s519 = ssub.s32 %s14, 2
        // Predicated region
        $region53: #{model_forward.1} parent=51 // pred_check
          %p520 = pneg %p111
        $region54: #{model_forward.1} parent=51 // pred_check_branch
          %522 = sbr.rel (%p520) target = $region56
        $region55: #{model_forward.1} parent=51 // pred_region
          %p523 = scmp.lt.s32.totalorder %s20, 1
          %s524 = scalar_select %p523, %s20, 1
          %s525 = smul.addr %s524, 16
          %s526 = smul.addr %s525, 8
          %s527 = scalar_lea.vmem %s3, %s526
        $region56: #{model_forward.1} parent=51 // pred_fallthru
          _
      $region52: #{model_forward.1} parent=5 // pred_fallthru
        _
    $region6: #{model_forward.1} parent=1 // loop_footer
      %s18 = sadd.s32 1, %s14
    $region7: #{model_forward.1} parent=1 // loop_footer_branch
      %13 = sbr.rel target = $region3
    $region8: #{model_forward.1} parent=1 // loop_exit
      _
    %528 = vsyncpa [#allocation3], 1
    %s529 = scalar_lea.sflag [#allocation3], 1
    %530 = vsyncpa %s529, 1
    %531 = vsyncpa [#allocation4], 1
    %s532 = scalar_lea.sflag [#allocation4], 1
    %533 = vsyncpa %s532, 1
    %534 = vsyncpa [#allocation7], 1

</llo_original>
